<compile_context>
chip_gen: v7x
topology: tpu7x:2x2x1
jax: 0.10.0
libtpu: 0.0.40
codegen_flags: <defaults>
</compile_context>

<pallas_src>
import math

import jax
import jax.numpy as jnp
from jax.experimental import pallas as pl
from jax.experimental.pallas import tpu as pltpu

EPS = 1e-6


def _sublayer_connection_kernel(x_ref, w_ref, bias_ref, o_ref, xn_scr):
    # Grid is (row_tiles, col_tiles); the column axis MUST stay ordered
    # ("arbitrary") and j-inner, since xn_scr is filled at j == 0 and reused
    # by every subsequent column tile of the same row tile.
    j = pl.program_id(1)
    tn = o_ref.shape[-1]

    # ---- LayerNorm once per row tile (first column tile only), cached in a
    #      bf16 VMEM scratch for reuse across column tiles.
    #      gamma/beta are already folded into W/bias by the wrapper. ----
    @pl.when(j == 0)
    def _():
        x = x_ref[...].astype(jnp.float32)                         # (TM, D)
        d = x.shape[-1]
        # One pass over the tile: sum and sum-of-squares are independent
        # reductions (no serialization through the mean).
        s = jnp.sum(x, axis=-1, keepdims=True)                     # (TM, 1)
        sq = jnp.sum(x * x, axis=-1, keepdims=True)                # (TM, 1)
        mean = s * (1.0 / d)
        # torch .std(): unbiased (N-1) variance; eps added to std.
        var = jnp.maximum((sq - s * mean) * (1.0 / (d - 1)), 0.0)
        std = jnp.sqrt(var)
        inv = pl.reciprocal(std + EPS, approx=True)                # EUP, per-row
        xn_scr[...] = ((x - mean) * inv).astype(xn_scr.dtype)      # f32 -> bf16

    # ---- sublayer: dense column tile on the MXU (bf16 operands, f32 acc) ----
    y = jnp.dot(xn_scr[...], w_ref[...],
                preferred_element_type=jnp.float32) + bias_ref[...]

    # ---- dropout (eval mode => identity) + residual on this column slice ----
    if tn % 128 == 0:
        col0 = pl.multiple_of(j * tn, 128)
    else:
        col0 = j * tn
    x_slice = x_ref[:, pl.ds(col0, tn)].astype(jnp.float32)
    o_ref[...] = (x_slice + y).astype(o_ref.dtype)


def _round_up(x, m):
    return ((x + m - 1) // m) * m


def _device_kind():
    try:
        return jax.devices()[0].device_kind.lower()
    except Exception:
        return ""


def _generation_defaults(kind):
    """Returns (target_tile_rows, vmem_limit_bytes, two_tensorcores, deep_w_buf)."""
    if "v7" in kind:
        # 64 MiB physical VMEM per TensorCore -> leave headroom for Mosaic
        # internal scratch; 2 TCs per chip.
        return 512, 48 * 1024 * 1024, True, False
    if "v6" in kind:
        # 128 MiB VMEM; ~656 FLOPs/byte roofline threshold -> 1024-row tiles.
        return 1024, 100 * 1024 * 1024, False, False
    if "v5" in kind:
        # 128 MiB VMEM; bandwidth-poorest gen -> deeper W buffering when tiled.
        return 512, 100 * 1024 * 1024, False, True
    # Unknown generation: conservative.
    return 512, 64 * 1024 * 1024, False, False


def _vmem_footprint(tile_rows, tile_cols, d, w_buffers=2):
    x_bytes = 2 * tile_rows * d * 4                # x f32 tile, double-buffered
    xn_bytes = tile_rows * d * 2                   # bf16 LN scratch (1 buffer)
    w_bytes = w_buffers * d * tile_cols * 2        # W bf16 column tile
    o_bytes = 2 * tile_rows * tile_cols * 4        # out f32 tile, double-buffered
    b_bytes = 2 * tile_cols * 4                    # bias tile
    return x_bytes + xn_bytes + w_bytes + o_bytes + b_bytes


def _select_tiles(rows, d, kind):
    target_rows, vmem_limit, two_cores, deep_w = _generation_defaults(kind)
    budget = int(vmem_limit * 0.85)

    # Balanced row tiles: avoid a nearly-empty tail tile; keep a multiple of 16
    # so the bf16 xn scratch respects sublane packing.
    n_row_tiles = max(1, math.ceil(rows / target_rows))
    if two_cores and n_row_tiles == 1 and rows > 16:
        # Megacore: make sure both TensorCores get a row tile.
        n_row_tiles = 2
    tile_rows = max(16, _round_up(math.ceil(rows / n_row_tiles), 16))

    # Column candidates: prefer a single column tile (W fetched from HBM once),
    # then lane-dense divisors of D.
    col_candidates = [d] + [c for c in (1024, 512, 256, 128)
                            if c < d and d % c == 0]

    while True:
        for tc in col_candidates:
            w_buf = 3 if (deep_w and tc < d) else 2
            if _vmem_footprint(tile_rows, tc, d, w_buf) <= budget:
                return tile_rows, tc, vmem_limit, deep_w
        if tile_rows <= 16:
            # Last resort: smallest tiles, let the compiler complain if at all.
            return tile_rows, col_candidates[-1], vmem_limit, deep_w
        tile_rows = max(16, _round_up(tile_rows // 2, 16))


def sublayer_connection(x, gamma, beta, w, bias):
    """Fused pre-norm residual block: out = x + (LayerNorm(x) @ W + b).

    x: (rows, D) float32. gamma/beta/bias: (D,). w: (D, D).
    """
    rows, d = x.shape
    out_dtype = x.dtype
    kind = _device_kind()

    tile_rows, tile_cols, vmem_limit, deep_w = _select_tiles(rows, d, kind)

    # Pad the row tail instead of requiring divisibility.  Padded rows are
    # zero -> LN stays finite (0 * 1/eps = 0) and extras are sliced off.
    padded_rows = _round_up(rows, tile_rows)
    if padded_rows != rows:
        x = jnp.pad(x, ((0, padded_rows - rows), (0, 0)))

    # Fold LayerNorm affine into the dense layer (in f32, BEFORE bf16 cast):
    #   (g*(x-m)/s + b) @ W + bias == ((x-m)/s) @ (g[:,None]*W) + (b@W + bias)
    gamma_f = gamma.astype(jnp.float32)
    beta_f = beta.astype(jnp.float32)
    w_f = w.astype(jnp.float32)
    w_folded = gamma_f[:, None] * w_f
    bias_folded = (bias.astype(jnp.float32) + beta_f @ w_f).reshape(1, d)
    # bf16 MXU operands (f32 accumulation in-kernel); halves W HBM traffic.
    w_bf16 = w_folded.astype(jnp.bfloat16)

    grid = (padded_rows // tile_rows, d // tile_cols)

    # Deeper W buffering only on the bandwidth-poorest generation when the
    # column axis is actually tiled.
    if deep_w and tile_cols < d:
        w_spec = pl.BlockSpec((d, tile_cols), lambda i, j: (0, j),
                              pipeline_mode=pl.Buffered(3))
    else:
        w_spec = pl.BlockSpec((d, tile_cols), lambda i, j: (0, j))

    out = pl.pallas_call(
        _sublayer_connection_kernel,
        out_shape=jax.ShapeDtypeStruct((padded_rows, d), out_dtype),
        grid_spec=pltpu.PrefetchScalarGridSpec(
            num_scalar_prefetch=0,
            grid=grid,
            in_specs=[
                # x tile: constant block index across j -> stays resident while
                # all column tiles of the same row tile are produced.
                pl.BlockSpec((tile_rows, d), lambda i, j: (i, 0)),
                w_spec,                                             # W col tile
                pl.BlockSpec((1, tile_cols), lambda i, j: (0, j)),  # bias tile
            ],
            out_specs=pl.BlockSpec((tile_rows, tile_cols),
                                   lambda i, j: (i, j)),
            scratch_shapes=[
                # cached LayerNorm(x) for the current row tile, in bf16.
                pltpu.VMEM((tile_rows, d), jnp.bfloat16),
            ],
        ),
        compiler_params=pltpu.CompilerParams(
            # Row axis is embarrassingly parallel (megacore on v7x); column
            # axis must stay ordered so j==0 fills the scratch first.
            dimension_semantics=("parallel", "arbitrary"),
            vmem_limit_bytes=vmem_limit,
        ),
    )(x, w_bf16, bias_folded)

    return out[:rows]


def reference(x, gamma, beta, w, bias):
    mean = jnp.mean(x, axis=-1, keepdims=True)
    std = jnp.std(x, axis=-1, keepdims=True, ddof=1)   # torch .std is unbiased
    xn = gamma * (x - mean) / (std + EPS) + beta
    y = xn @ w + bias
    return x + y


if __name__ == "__main__":
    batch, seq, hidden = 2, 8, 128
    rows = batch * seq

    key = jax.random.PRNGKey(0)
    kx, kw, kg, kb = jax.random.split(key, 4)
    x = jax.random.normal(kx, (batch, seq, hidden), dtype=jnp.float32)

    # Deterministic parameter init (LayerNorm affine non-trivial to exercise
    # the gamma/beta folding; sublayer dense: small random).
    gamma = 1.0 + 0.1 * jax.random.normal(kg, (hidden,), dtype=jnp.float32)
    beta = 0.1 * jax.random.normal(kb, (hidden,), dtype=jnp.float32)
    w = jax.random.normal(kw, (hidden, hidden), dtype=jnp.float32) * 0.02
    bias = jnp.zeros((hidden,), dtype=jnp.float32)

    x2 = x.reshape(rows, hidden)
    out = sublayer_connection(x2, gamma, beta, w, bias)
    out = jax.block_until_ready(out)

    ref = reference(x2, gamma, beta, w, bias)
    # Tolerance accounts for bf16 matmul operands (f32 accumulation) and the
    # approx EUP reciprocal.
    assert jnp.allclose(out, ref, atol=1e-2, rtol=1e-2), \
        f"max abs err {jnp.max(jnp.abs(out - ref))}"

    out = out.reshape(batch, seq, hidden)
    print("KERNEL_OK")
</pallas_src>

<mosaic_0001>
module attributes {stable_mosaic.version = 11 : i64} {
  func.func @_sublayer_connection_kernel(%arg0: i32, %arg1: i32, %arg2: memref<16x128xf32, #tpu.memory_space<vmem>>, %arg3: memref<128x128xbf16, #tpu.memory_space<vmem>>, %arg4: memref<1x128xf32, #tpu.memory_space<vmem>>, %arg5: memref<16x128xf32, #tpu.memory_space<vmem>>, %arg6: memref<16x128xbf16, #tpu.memory_space<vmem>>) attributes {dimension_semantics = [#tpu.dimension_semantics<parallel>, #tpu.dimension_semantics<arbitrary>], iteration_bounds = array<i64: 1, 1>, scalar_prefetch = 0 : i64, scratch_operands = 1 : i64, tpu.core_type = #tpu.core_type<tc>, window_params = [{transform_indices = @transform_0, window_bounds = array<i64: 16, 128>}, {transform_indices = @transform_1, window_bounds = array<i64: 128, 128>}, {transform_indices = @transform_2, window_bounds = array<i64: 1, 128>}, {transform_indices = @transform_3, window_bounds = array<i64: 16, 128>}]} {
    %c0_i32 = arith.constant 0 : i32
    %0 = arith.cmpi eq, %arg1, %c0_i32 : i32
    %1 = arith.extui %0 : i1 to i32
    %c0_i32_0 = arith.constant 0 : i32
    %2 = arith.cmpi ne, %1, %c0_i32_0 : i32
    scf.if %2 {
      %c0_9 = arith.constant 0 : index
      %c0_10 = arith.constant 0 : index
      %15 = vector.load %arg2[%c0_9, %c0_10] : memref<16x128xf32, #tpu.memory_space<vmem>>, vector<16x128xf32>
      %cst_11 = arith.constant dense<0.000000e+00> : vector<16xf32>
      %16 = vector.multi_reduction <add>, %15, %cst_11 [1] : vector<16x128xf32> to vector<16xf32>
      %17 = vector.shape_cast %16 : vector<16xf32> to vector<16x1xf32>
      %18 = arith.mulf %15, %15 : vector<16x128xf32>
      %cst_12 = arith.constant dense<0.000000e+00> : vector<16xf32>
      %19 = vector.multi_reduction <add>, %18, %cst_12 [1] : vector<16x128xf32> to vector<16xf32>
      %20 = vector.shape_cast %19 : vector<16xf32> to vector<16x1xf32>
      %cst_13 = arith.constant 7.812500e-03 : f32
      %21 = vector.broadcast %cst_13 : f32 to vector<16x1xf32>
      %22 = arith.mulf %17, %21 : vector<16x1xf32>
      %23 = arith.mulf %17, %22 : vector<16x1xf32>
      %24 = arith.subf %20, %23 : vector<16x1xf32>
      %cst_14 = arith.constant 0.00787401571 : f32
      %25 = vector.broadcast %cst_14 : f32 to vector<16x1xf32>
      %26 = arith.mulf %24, %25 : vector<16x1xf32>
      %cst_15 = arith.constant 0.000000e+00 : f32
      %27 = vector.broadcast %cst_15 : f32 to vector<16x1xf32>
      %28 = arith.maximumf %26, %27 : vector<16x1xf32>
      %29 = math.sqrt %28 : vector<16x1xf32>
      %cst_16 = arith.constant 9.99999997E-7 : f32
      %30 = vector.broadcast %cst_16 : f32 to vector<16x1xf32>
      %31 = arith.addf %29, %30 : vector<16x1xf32>
      %32 = tpu.reciprocal %31 {approx = true} : vector<16x1xf32> -> vector<16x1xf32>
      %33 = vector.broadcast %22 : vector<16x1xf32> to vector<16x128xf32>
      %34 = arith.subf %15, %33 : vector<16x128xf32>
      %35 = vector.broadcast %32 : vector<16x1xf32> to vector<16x128xf32>
      %36 = arith.mulf %34, %35 : vector<16x128xf32>
      %37 = arith.truncf %36 : vector<16x128xf32> to vector<16x128xbf16>
      %c0_17 = arith.constant 0 : index
      %c0_18 = arith.constant 0 : index
      %38 = vector.load %arg6[%c0_17, %c0_18] : memref<16x128xbf16, #tpu.memory_space<vmem>>, vector<16x128xbf16>
      tpu.vector_store %arg6[%c0_17, %c0_18], %37 {strides = array<i32>} : memref<16x128xbf16, #tpu.memory_space<vmem>>, vector<16x128xbf16>,
    } else {
    }
    %c0 = arith.constant 0 : index
    %c0_1 = arith.constant 0 : index
    %3 = vector.load %arg6[%c0, %c0_1] : memref<16x128xbf16, #tpu.memory_space<vmem>>, vector<16x128xbf16>
    %c0_2 = arith.constant 0 : index
    %c0_3 = arith.constant 0 : index
    %4 = vector.load %arg3[%c0_2, %c0_3] : memref<128x128xbf16, #tpu.memory_space<vmem>>, vector<128x128xbf16>
    %cst = arith.constant dense<0.000000e+00> : vector<16x128xf32>
    %5 = tpu.matmul %3, %4, %cst {dimension_numbers = #tpu.dot_dimension_numbers<[1], [0], [0], [1], [0, 0, 1, 1], [], []>} : vector<16x128xbf16>, vector<128x128xbf16>, vector<16x128xf32> -> vector<16x128xf32>
    %c0_4 = arith.constant 0 : index
    %c0_5 = arith.constant 0 : index
    %6 = vector.load %arg4[%c0_4, %c0_5] : memref<1x128xf32, #tpu.memory_space<vmem>>, vector<1x128xf32>
    %7 = vector.broadcast %6 : vector<1x128xf32> to vector<16x128xf32>
    %8 = arith.addf %5, %7 : vector<16x128xf32>
    %c128_i32 = arith.constant 128 : i32
    %9 = arith.muli %arg1, %c128_i32 : i32
    %10 = tpu.assume_multiple %9, 128 : i32
    %c0_6 = arith.constant 0 : index
    %11 = arith.index_cast %10 : i32 to index
    %12 = vector.load %arg2[%c0_6, %11] : memref<16x128xf32, #tpu.memory_space<vmem>>, vector<16x128xf32>
    %13 = arith.addf %12, %8 : vector<16x128xf32>
    %c0_7 = arith.constant 0 : index
    %c0_8 = arith.constant 0 : index
    %14 = vector.load %arg5[%c0_7, %c0_8] : memref<16x128xf32, #tpu.memory_space<vmem>>, vector<16x128xf32>
    tpu.vector_store %arg5[%c0_7, %c0_8], %13 {strides = array<i32>} : memref<16x128xf32, #tpu.memory_space<vmem>>, vector<16x128xf32>,
    return
  }
  func.func @transform_0(%arg0: i32, %arg1: i32) -> (i32, i32) {
    %c0_i32 = arith.constant 0 : i32
    %c0_i32_0 = arith.constant 0 : i32
    return %arg0, %c0_i32 : i32, i32
  }
  func.func @transform_1(%arg0: i32, %arg1: i32) -> (i32, i32) {
    %c0_i32 = arith.constant 0 : i32
    %c0_i32_0 = arith.constant 0 : i32
    return %c0_i32, %arg1 : i32, i32
  }
  func.func @transform_2(%arg0: i32, %arg1: i32) -> (i32, i32) {
    %c0_i32 = arith.constant 0 : i32
    %c0_i32_0 = arith.constant 0 : i32
    return %c0_i32, %arg1 : i32, i32
  }
  func.func @transform_3(%arg0: i32, %arg1: i32) -> (i32, i32) {
    %c0_i32 = arith.constant 0 : i32
    return %arg0, %arg1 : i32, i32
  }
}

</mosaic_0001>

<llo_original>
// kernel: tpu_custom_call.1
$region0: #{tpu_custom_call.1}
  #allocation0 [shape = 'u32[]', space=smem, size = 0x4, offset = 0x4, fixed_abs, tag = 'smem constant byte address 0x4 - core index']
  #allocation1 [shape = 'u32[144,128]{1,0:T(1,128)}', space=vmem, size = 0x12000, scoped, tag = 'internal scratch']
  #allocation2 [shape = 'bf16[16,128]{1,0:T(16,128)(2,1)}', space=vmem, size = 0x1000, scoped, tag = 'scratch operand']
  %s0 = inlined_call_operand.hbm [shape: f32[16,128], index: 0, kind: input, shape index: {}]
  %s1 = inlined_call_operand.hbm [shape: bf16[128,128], index: 1, kind: input, shape index: {}]
  %s2 = inlined_call_operand.hbm [shape: f32[1,128], index: 2, kind: input, shape index: {}]
  %s3 = inlined_call_operand.hbm [shape: f32[16,128], index: 3, kind: output, shape index: {}]
  %s4 = sld [smem:[#allocation0]]
  $region38: #{tpu_custom_call.1} parent=0
    _
  %s6 = ssub.s32 1, %s4
  %s7 = scalar_select 0, %s6, %s4
  $region1: #{tpu_custom_call.1} parent=0
    #allocation3 [shape = 'u8[8192]{0}', space=vmem, size = 0x2000, scoped, tag = 'input window, operand 0, single buffered']
    #allocation4 [shape = 's32[1]{0}', space=sflag, size = 0x4, scoped, tag = 'scoped memory for tpu_custom_call.1']
    #allocation5 [shape = 's32[1]{0}', space=sflag, size = 0x4, scoped, tag = 'scoped memory for tpu_custom_call.1']
    #allocation6 [shape = 'u8[32768]{0}', space=vmem, size = 0x8000, scoped, tag = 'input window, operand 1, single buffered']
    #allocation7 [shape = 's32[1]{0}', space=sflag, size = 0x4, scoped, tag = 'scoped memory for tpu_custom_call.1']
    #allocation8 [shape = 'u8[512]{0}', space=vmem, size = 0x400, scoped, tag = 'input window, operand 2, single buffered']
    #allocation9 [shape = 'u8[8192]{0}', space=vmem, size = 0x2000, scoped, tag = 'output window, operand 0, single buffered']
    %8 = vsyncpa [#allocation4], 0
    %9 = vsyncpa [#allocation7], 0
    %10 = vsyncpa [#allocation5], 0
    // Predicated region
    $region2: #{tpu_custom_call.1} parent=1 // pred_check
      _
    $region3: #{tpu_custom_call.1} parent=1 // pred_check_branch
      %12 = sbr.rel (0) target = $region5
    $region4: #{tpu_custom_call.1} parent=1 // pred_region
      %s14 = ssub.s32 256, 256
      %15 = vsyncadd [#allocation4], %s14
      %s16 = sshll.u32 [#allocation3], 4
      %s17 = int_to_ptr.vmem [resolvable:$true] %s16
      %22 = dma.hbm_to_vmem [thread:$0]  %s0, 256, %s17, [#allocation4], 128, 128, 8
    $region5: #{tpu_custom_call.1} parent=1 // pred_fallthru
      _
    // Predicated region
    $region6: #{tpu_custom_call.1} parent=1 // pred_check
      _
    $region7: #{tpu_custom_call.1} parent=1 // pred_check_branch
      %24 = sbr.rel (0) target = $region9
    $region8: #{tpu_custom_call.1} parent=1 // pred_region
      %s26 = ssub.s32 1024, 1024
      %27 = vsyncadd [#allocation7], %s26
      %s28 = sshll.u32 [#allocation6], 4
      %s29 = int_to_ptr.vmem [resolvable:$true] %s28
      %34 = dma.hbm_to_vmem [thread:$0]  %s1, 1024, %s29, [#allocation7], 64, 64, 4
    $region9: #{tpu_custom_call.1} parent=1 // pred_fallthru
      _
    // Predicated region
    $region10: #{tpu_custom_call.1} parent=1 // pred_check
      _
    $region11: #{tpu_custom_call.1} parent=1 // pred_check_branch
      %36 = sbr.rel (0) target = $region13
    $region12: #{tpu_custom_call.1} parent=1 // pred_region
      %s38 = ssub.s32 16, 16
      %39 = vsyncadd [#allocation7], %s38
      %s41 = sshll.u32 [#allocation8], 4
      %s42 = int_to_ptr.vmem [resolvable:$true] %s41
      %44 = dma.hbm_to_vmem [thread:$0]  %s2, 16, %s42, [#allocation7]
    $region13: #{tpu_custom_call.1} parent=1 // pred_fallthru
      _
    // Predicated region
    $region14: #{tpu_custom_call.1} parent=1 // pred_check
      _
    $region15: #{tpu_custom_call.1} parent=1 // pred_check_branch
      %46 = sbr.rel (0) target = $region17
    $region16: #{tpu_custom_call.1} parent=1 // pred_region
      %47 = dma.done [#allocation4], 256
    $region17: #{tpu_custom_call.1} parent=1 // pred_fallthru
      _
    // Predicated region
    $region18: #{tpu_custom_call.1} parent=1 // pred_check
      _
    $region19: #{tpu_custom_call.1} parent=1 // pred_check_branch
      %49 = sbr.rel (0) target = $region21
    $region20: #{tpu_custom_call.1} parent=1 // pred_region
      %50 = dma.done [#allocation7], 1024
    $region21: #{tpu_custom_call.1} parent=1 // pred_fallthru
      _
    // Predicated region
    $region22: #{tpu_custom_call.1} parent=1 // pred_check
      _
    $region23: #{tpu_custom_call.1} parent=1 // pred_check_branch
      %52 = sbr.rel (0) target = $region25
    $region24: #{tpu_custom_call.1} parent=1 // pred_region
      %53 = dma.done [#allocation7], 16
    $region25: #{tpu_custom_call.1} parent=1 // pred_fallthru
      _
    %p55 = scmp.eq.s32.totalorder 0, 0
    // Predicated region
    $region26: #{tpu_custom_call.1} parent=1 // pred_check
      %p56 = pneg %p55
    $region27: #{tpu_custom_call.1} parent=1 // pred_check_branch
      %58 = sbr.rel (%p56) target = $region29
    $region28: #{tpu_custom_call.1} parent=1 // pred_region
      %v59 = vld [vmem:[#allocation3] sm:$0xff]
      %v60 = vld [vmem:[#allocation3 + $0x8] sm:$0xff]
      %61 = vadd.xlane.f32.xlu0 %v59
      %v62 = vpop.xlane.xlu0 %61
      %63 = vadd.xlane.f32.xlu0 %v60
      %v64 = vpop.xlane.xlu0 %63
      %v65 = vmul.f32 %v59, %v59
      %v66 = vmul.f32 %v60, %v60
      %67 = vadd.xlane.f32.xlu0 %v65
      %v68 = vpop.xlane.xlu0 %67
      %69 = vadd.xlane.f32.xlu0 %v66
      %v70 = vpop.xlane.xlu0 %69
      %v71 = vmul.f32 %v62, 0.0078125
      %v72 = vmul.f32 %v64, 0.0078125
      %v73 = vmul.f32 %v62, %v71
      %v74 = vmul.f32 %v64, %v72
      %v75 = vsub.f32 %v68, %v73
      %v76 = vsub.f32 %v70, %v74
      %v77 = vmul.f32 %v75, 0.007874016
      %v78 = vmul.f32 %v76, 0.007874016
      %v79 = vmax.f32 %v77, 0.0
      %v80 = vmax.f32 %v78, 0.0
      %v81 = vrsqrt.pop %v79
      %v82 = vmul.f32 %v79, %v81
      %vm83 = vcmp.eq.f32.partialorder %v79, inf
      %v84 = vsel %vm83, %v79, %v82
      %vm85 = vcmp.eq.f32.partialorder %v79, 0.0
      %v86 = vand.u32 %v79, 2147483648
      %v87 = vsel %vm85, %v86, %v84
      %v88 = vrsqrt.pop %v80
      %v89 = vmul.f32 %v80, %v88
      %vm90 = vcmp.eq.f32.partialorder %v80, inf
      %v91 = vsel %vm90, %v80, %v89
      %vm92 = vcmp.eq.f32.partialorder %v80, 0.0
      %v93 = vand.u32 %v80, 2147483648
      %v94 = vsel %vm92, %v93, %v91
      %v95 = vadd.f32 %v87, 1e-06
      %v96 = vadd.f32 %v94, 1e-06
      %v97 = vrcp.pop %v95
      %v98 = vrcp.pop %v96
      %v99 = vsub.f32 %v59, %v71
      %v100 = vsub.f32 %v60, %v72
      %v101 = vmul.f32 %v99, %v97
      %v102 = vmul.f32 %v100, %v98
      %v103 = vpack.c.bf16 %v102, %v101
      %104 = vst [vmem:[#allocation2] sm:$0xff] %v103
    $region29: #{tpu_custom_call.1} parent=1 // pred_fallthru
      _
    %v105 = vld [vmem:[#allocation2] sm:$0xff]
    %v106 = vld [vmem:[#allocation6] sm:$0xf]
    %v107 = vld [vmem:[#allocation6 + $0x4] sm:$0xf]
    %v108 = vld [vmem:[#allocation6 + $0x8] sm:$0xf]
    %v109 = vld [vmem:[#allocation6 + $0xc] sm:$0xf]
    %v110 = vld [vmem:[#allocation6 + $0x10] sm:$0xf]
    %v111 = vld [vmem:[#allocation6 + $0x14] sm:$0xf]
    %v112 = vld [vmem:[#allocation6 + $0x18] sm:$0xf]
    %v113 = vld [vmem:[#allocation6 + $0x1c] sm:$0xf]
    %v114 = vld [vmem:[#allocation6 + $0x20] sm:$0xf]
    %v115 = vld [vmem:[#allocation6 + $0x24] sm:$0xf]
    %v116 = vld [vmem:[#allocation6 + $0x28] sm:$0xf]
    %v117 = vld [vmem:[#allocation6 + $0x2c] sm:$0xf]
    %v118 = vld [vmem:[#allocation6 + $0x30] sm:$0xf]
    %v119 = vld [vmem:[#allocation6 + $0x34] sm:$0xf]
    %v120 = vld [vmem:[#allocation6 + $0x38] sm:$0xf]
    %v121 = vld [vmem:[#allocation6 + $0x3c] sm:$0xf]
    %v122 = vld [vmem:[#allocation8] sm:$0x1]
    %v124 = vlaneseq
    %v125 = vshrl.u32 %v124, 7
    %v126 = vsub.s32 0, %v125
    %v127 = vrot.slane %v122, %v126
    %v145 = vunpack.c.l.b16 %v106
    %v146 = vunpack.c.l.b16 %v107
    %v147 = vunpack.c.l.b16 %v108
    %v148 = vunpack.c.l.b16 %v109
    %v149 = vunpack.c.l.b16 %v110
    %v150 = vunpack.c.l.b16 %v111
    %v151 = vunpack.c.l.b16 %v112
    %v152 = vunpack.c.l.b16 %v113
    %v153 = vunpack.c.l.b16 %v114
    %v154 = vunpack.c.l.b16 %v115
    %v155 = vunpack.c.l.b16 %v116
    %v156 = vunpack.c.l.b16 %v117
    %v157 = vunpack.c.l.b16 %v118
    %v158 = vunpack.c.l.b16 %v119
    %v159 = vunpack.c.l.b16 %v120
    %v160 = vunpack.c.l.b16 %v121
    %v161 = vpack.c.b16 %v146, %v145
    %v162 = vpack.c.b16 %v148, %v147
    %v163 = vpack.c.b16 %v150, %v149
    %v164 = vpack.c.b16 %v152, %v151
    %v165 = vpack.c.b16 %v154, %v153
    %v166 = vpack.c.b16 %v156, %v155
    %v167 = vpack.c.b16 %v158, %v157
    %v168 = vpack.c.b16 %v160, %v159
    %177 = vmatprep.subr.bf16.mxu0 0
    %178 = vmatpush1.bf16.msra.mxu0 %v161
    %179 = vmatprep.subr.bf16.mxu0 0
    %180 = vmatpush1.bf16.msra.mxu0 %v162
    %181 = vmatprep.subr.bf16.mxu0 0
    %182 = vmatpush1.bf16.msra.mxu0 %v163
    %183 = vmatprep.subr.bf16.mxu0 0
    %184 = vmatpush1.bf16.msra.mxu0 %v164
    %185 = vmatprep.subr.bf16.mxu0 0
    %186 = vmatpush1.bf16.msra.mxu0 %v165
    %187 = vmatprep.subr.bf16.mxu0 0
    %188 = vmatpush1.bf16.msra.mxu0 %v166
    %189 = vmatprep.subr.bf16.mxu0 0
    %190 = vmatpush1.bf16.msra.mxu0 %v167
    %191 = vmatprep.subr.bf16.mxu0 0
    %192 = vmatpush1.bf16.msra.mxu0 %v168
    %193 = vmatprep.subr.bf16.mxu0 0
    %194 = vmatpush1.bf16.msra.mxu0 0
    %195 = vmatprep.subr.bf16.mxu0 0
    %196 = vmatpush1.bf16.msra.mxu0 0
    %197 = vmatprep.subr.bf16.mxu0 0
    %198 = vmatpush1.bf16.msra.mxu0 0
    %199 = vmatprep.subr.bf16.mxu0 0
    %200 = vmatpush1.bf16.msra.mxu0 0
    %201 = vmatprep.subr.bf16.mxu0 0
    %202 = vmatpush1.bf16.msra.mxu0 0
    %203 = vmatprep.subr.bf16.mxu0 0
    %204 = vmatpush1.bf16.msra.mxu0 0
    %205 = vmatprep.subr.bf16.mxu0 0
    %206 = vmatpush1.bf16.msra.mxu0 0
    %207 = vmatprep.subr.bf16.mxu0 0
    %208 = vmatpush1.bf16.msra.mxu0 0
    %209 = vmatprep.mubr.bf16.mxu0 0
    %210 = vmatmul.mubr.bf16.gmra.mrb[0].mxu0 %v105
    %v211 = vpop.f32.mrb[0].mxu0
    %v212 = vadd.f32 %v127, %v211
    %v213 = vpop.f32.mrb[0].mxu0
    %v214 = vpop.f32.mrb[0].mxu0
    %v215 = vadd.f32 %v127, %v214
    %v216 = vpop.f32.mrb[0].mxu0
    %217 = vdwg.mxu0
    %s218 = smul.u32 0, 128
    %s219 = sshra.s32 %s218, 7
    %s220 = sand.u32 %s218, 127
    %s221 = scalar_lea.vmem [#allocation3], %s219
    %v222 = vld [vmem:[%s221] sm:$0xff]
    %v223 = vld [vmem:[%s221 + $0x8] sm:$0xff]
    %v224 = vadd.f32 %v222, %v212
    %v225 = vadd.f32 %v223, %v215
    %226 = vst [vmem:[#allocation9] sm:$0xff] %v224
    %227 = vst [vmem:[#allocation9 + $0x8] sm:$0xff] %v225
    // Predicated region
    $region30: #{tpu_custom_call.1} parent=1 // pred_check
      _
    $region31: #{tpu_custom_call.1} parent=1 // pred_check_branch
      %229 = sbr.rel (0) target = $region33
    $region32: #{tpu_custom_call.1} parent=1 // pred_region
      %s231 = ssub.s32 256, 256
      %232 = vsyncadd [#allocation5], %s231
      %s233 = sshll.u32 [#allocation9], 4
      %s234 = int_to_ptr.vmem [resolvable:$true] %s233
      %239 = dma.vmem_to_hbm [thread:$0]  %s234, 256, %s3, [#allocation5], 128, 128, 8
    $region33: #{tpu_custom_call.1} parent=1 // pred_fallthru
      _
    // Predicated region
    $region34: #{tpu_custom_call.1} parent=1 // pred_check
      _
    $region35: #{tpu_custom_call.1} parent=1 // pred_check_branch
      %241 = sbr.rel (0) target = $region37
    $region36: #{tpu_custom_call.1} parent=1 // pred_region
      %242 = dma.done [#allocation5], 256
    $region37: #{tpu_custom_call.1} parent=1 // pred_fallthru
      _
    %243 = vsyncpa [#allocation4], 1
    %244 = vsyncpa [#allocation7], 1
    %245 = vsyncpa [#allocation5], 1

</llo_original>
